<compile_context>
chip_gen: v5e
topology: v5e:2x2
jax: 0.10.0
libtpu: 0.0.40
codegen_flags: <defaults>
</compile_context>

<pallas_src>
import jax
import jax.numpy as jnp
from jax.experimental import pallas as pl
from jax.experimental.pallas import tpu as pltpu

_HID = 256    # fused hidden width: 3*64 = 192, zero-padded to 256
_GRAIN = 128  # batch-tile granularity -> (tb//128, 128) lane+sublane-dense output blocks


def _siamese_kernel(x1_ref, x2_ref,
                    wh_ref, bh_ref,
                    wt_ref, bt_ref,
                    wo_ref, bo_ref,
                    out_ref):
    # Elementwise feature construction (f32, VPU).
    x1 = x1_ref[...]
    x2 = x2_ref[...]
    diff = x1 - x2
    l2 = diff * diff            # torch.multiply(diff, diff)
    prod = x1 * x2              # torch.multiply(x1, x2)

    # Lane-concat (128-aligned) -> one wide K=2F, N=256 matmul.
    xcat = jnp.concatenate([l2, prod], axis=-1)                       # (tb, 2F)

    # p_all == [path1 | path2 | path3 | 0-pad]; BN folded into wh/bh.
    # Operands cast to the (possibly bf16) weight dtype; f32 accumulation.
    p_all = jnp.maximum(
        jnp.dot(xcat.astype(wh_ref.dtype), wh_ref[...],
                preferred_element_type=jnp.float32) + bh_ref[...],
        0.0)

    # top = ReLU(BN(Linear(concat([p1,p2,p3])))); K padded 192->256 (padded
    # columns of p_all are exactly zero).
    top = jnp.maximum(
        jnp.dot(p_all.astype(wt_ref.dtype), wt_ref[...],
                preferred_element_type=jnp.float32) + bt_ref[...],
        0.0)

    # out = Linear(256 -> 1): VPU multiply + lane reduce (no N=1 MXU pass).
    tbr = out_ref.shape[0]                                  # tb // 128
    wo = wo_ref[...].reshape(1, 1, _HID)
    top3 = top.reshape(tbr, 128, _HID)                      # split sublane dim only
    col3 = jnp.sum(top3 * wo, axis=-1, keepdims=True)       # (tbr, 128, 1) f32

    # Repack per-row scalars into a lane-dense (tbr, 128) slab so the output
    # store is full-width vst (not masked (tb,1) partial stores).  Done with
    # an identity mask + sublane reduction: only natively-supported ops.
    r = jax.lax.broadcasted_iota(jnp.int32, (128, 128), 0)
    c = jax.lax.broadcasted_iota(jnp.int32, (128, 128), 1)
    eye = jnp.where(r == c, 1.0, 0.0)                       # (128, 128) f32
    out_ref[...] = jnp.sum(col3 * eye[None, :, :], axis=1) + bo_ref[...]


def _fold_bn(w, b, gamma, beta, mean, var, eps=1e-5):
    """Fold eval-mode BatchNorm1d into the preceding Linear.

    w: (in, out), b: (out,).  Returns (w', b') with BN applied after Linear.
    """
    scale = gamma / jnp.sqrt(var + eps)          # (out,)
    shift = beta - mean * scale                  # (out,)
    return w * scale[None, :], b * scale + shift


def prepare_params(params, feat_len=128, mxu_dtype=jnp.float32):
    """One-time parameter glue: fold BN, fuse & pad weights, cast MXU operands.

    mxu_dtype=jnp.bfloat16 halves weight VMEM/DMA and runs the MXU at bf16
    peak (accuracy-critical VPU math stays f32 in the kernel)."""
    F = feat_len
    w1, b1 = _fold_bn(params["w1"].T, params["b1"], *params["bn1"])   # (F, 64)
    w2, b2 = _fold_bn(params["w2"].T, params["b2"], *params["bn2"])   # (F, 64)
    w3, b3 = _fold_bn(params["w3"].T, params["b3"], *params["bn3"])   # (2F, 64)
    wt, bt = _fold_bn(params["wt"].T, params["bt"], *params["bnt"])   # (192, 256)
    wo, bo = params["wo"].T, params["bo"]                             # (256, 1), (1,)

    w3a, w3b = w3[:F, :], w3[F:, :]

    # Block-fused hidden weight:  [L2 | prod] @ w_h == [p1 | p2 | p3 | 0]
    w_h = jnp.zeros((2 * F, _HID), jnp.float32)
    w_h = w_h.at[:F, 0:64].set(w1)
    w_h = w_h.at[F:, 64:128].set(w2)
    w_h = w_h.at[:F, 128:192].set(w3a)
    w_h = w_h.at[F:, 128:192].set(w3b)
    b_h = jnp.zeros((_HID,), jnp.float32)
    b_h = b_h.at[0:64].set(b1).at[64:128].set(b2).at[128:192].set(b3)

    # Pad top-layer K from 192 -> 256 (padded p_all columns are exactly zero).
    wt_pad = jnp.zeros((_HID, _HID), jnp.float32).at[:192, :].set(wt)

    return dict(
        w_h=w_h.astype(mxu_dtype), b_h=b_h[None, :],        # (2F, 256), (1, 256)
        wt=wt_pad.astype(mxu_dtype), bt=bt[None, :],         # (256, 256), (1, 256)
        wo=wo.reshape(1, _HID), bo=bo.reshape(1, 1),         # f32 (VPU path)
    )


def siamese_forward_pallas(x1, x2, fused, *, tile_b=2048):
    """x1, x2: (B, feat_len) float32. fused: output of prepare_params.
    Returns (B,) float32."""
    B, F = x1.shape

    # Batch tile: multiple of 128 (dense output blocks), capped at tile_b, and
    # >= 2 grid steps whenever there is enough work (v7x megacore sharding).
    tile_b = max(_GRAIN, (int(tile_b) // _GRAIN) * _GRAIN)
    half = -(-B // (2 * _GRAIN)) * _GRAIN          # ~B/2 rounded up to 128
    tb = int(min(tile_b, max(_GRAIN, half)))

    B_pad = -(-B // tb) * tb
    if B_pad != B:
        pad = ((0, B_pad - B), (0, 0))
        x1 = jnp.pad(x1, pad)
        x2 = jnp.pad(x2, pad)

    grid = (B_pad // tb,)
    batch_spec = pl.BlockSpec((tb, F), lambda i: (i, 0))
    const2d = lambda shape: pl.BlockSpec(shape, lambda i: (0, 0))   # resident weights

    w_bytes = (fused["w_h"].size * fused["w_h"].dtype.itemsize
               + fused["wt"].size * fused["wt"].dtype.itemsize)
    flops = (2 * B_pad * (2 * F * _HID + _HID * _HID)   # two fused matmuls
             + 5 * B_pad * _HID + 3 * B_pad * F)        # projection + elementwise
    bytes_accessed = (4 * 2 * B_pad * F                 # x1, x2 (f32)
                      + w_bytes                         # w_h, wt
                      + 4 * (3 * _HID + 1)              # biases + wo + bo
                      + 4 * B_pad)                      # output

    out2d = pl.pallas_call(
        _siamese_kernel,
        out_shape=jax.ShapeDtypeStruct((B_pad // _GRAIN, _GRAIN), jnp.float32),
        grid=grid,
        in_specs=[
            batch_spec,                               # x1
            batch_spec,                               # x2
            const2d((2 * F, _HID)),                   # w_h
            const2d((1, _HID)),                       # b_h
            const2d((_HID, _HID)),                    # wt
            const2d((1, _HID)),                       # bt
            const2d((1, _HID)),                       # wo (row vector)
            const2d((1, 1)),                          # bo
        ],
        out_specs=pl.BlockSpec((tb // _GRAIN, _GRAIN), lambda i: (i, 0)),
        compiler_params=pltpu.CompilerParams(
            dimension_semantics=("parallel",),
            vmem_limit_bytes=32 * 1024 * 1024),
        cost_estimate=pl.CostEstimate(
            flops=flops, transcendentals=0, bytes_accessed=bytes_accessed),
    )(x1, x2,
      fused["w_h"], fused["b_h"],
      fused["wt"], fused["bt"],
      fused["wo"], fused["bo"])

    # Lane-dense slab -> flat batch vector; drop padding rows (== .flatten()).
    return out2d.reshape(-1)[:B]


def siamese_forward_ref(x1, x2, params):
    """Pure-JAX reference mirroring the PyTorch forward (eval mode)."""
    def bn(y, g, b, m, v, eps=1e-5):
        return g * (y - m) / jnp.sqrt(v + eps) + b

    diff = x1 - x2
    l2 = diff * diff
    prod = x1 * x2
    combine = jnp.concatenate([l2, prod], axis=1)
    p1 = jax.nn.relu(bn(l2 @ params["w1"].T + params["b1"], *params["bn1"]))
    p2 = jax.nn.relu(bn(prod @ params["w2"].T + params["b2"], *params["bn2"]))
    p3 = jax.nn.relu(bn(combine @ params["w3"].T + params["b3"], *params["bn3"]))
    concat = jnp.concatenate([p1, p2, p3], axis=1)
    top = jax.nn.relu(bn(concat @ params["wt"].T + params["bt"], *params["bnt"]))
    out = top @ params["wo"].T + params["bo"]
    return out.reshape(-1)


def make_params(key, feat_len=128):
    """Deterministic synthetic params; Linear weights in PyTorch (out, in) layout."""
    ks = jax.random.split(key, 16)

    def linear(kw, kb, fan_in, fan_out):
        bound = 1.0 / jnp.sqrt(fan_in)
        w = jax.random.uniform(kw, (fan_out, fan_in), jnp.float32, -bound, bound)
        b = jax.random.uniform(kb, (fan_out,), jnp.float32, -bound, bound)
        return w, b

    def bn_params(k, n):
        k1, k2, k3 = jax.random.split(k, 3)
        gamma = 1.0 + 0.1 * jax.random.normal(k1, (n,), jnp.float32)
        beta = 0.1 * jax.random.normal(k2, (n,), jnp.float32)
        mean = 0.1 * jax.random.normal(k3, (n,), jnp.float32)
        var = jnp.ones((n,), jnp.float32) * 0.9
        return gamma, beta, mean, var

    w1, b1 = linear(ks[0], ks[1], feat_len, 64)
    w2, b2 = linear(ks[2], ks[3], feat_len, 64)
    w3, b3 = linear(ks[4], ks[5], 2 * feat_len, 64)
    wt, bt = linear(ks[6], ks[7], 64 * 3, 256)
    wo, bo = linear(ks[8], ks[9], 256, 1)
    return dict(
        w1=w1, b1=b1, bn1=bn_params(ks[10], 64),
        w2=w2, b2=b2, bn2=bn_params(ks[11], 64),
        w3=w3, b3=b3, bn3=bn_params(ks[12], 64),
        wt=wt, bt=bt, bnt=bn_params(ks[13], 256),
        wo=wo, bo=bo,
    )


if __name__ == "__main__":
    key = jax.random.PRNGKey(0)
    feat_len = 128
    batch = 8

    k1, k2, kp = jax.random.split(key, 3)
    x1 = jax.random.normal(k1, (batch, feat_len), jnp.float32)
    x2 = jax.random.normal(k2, (batch, feat_len), jnp.float32)
    params = make_params(kp, feat_len)
    ref = siamese_forward_ref(x1, x2, params)

    # f32 MXU path: exact (1e-4) vs the f32 reference.
    fused_f32 = prepare_params(params, feat_len)
    out_f32 = jax.block_until_ready(siamese_forward_pallas(x1, x2, fused_f32))
    assert out_f32.shape == (batch,)
    assert jnp.allclose(out_f32, ref, atol=1e-4, rtol=1e-4), (out_f32, ref)

    # bf16 MXU operands (f32 accumulation): faster path, relaxed tolerance.
    fused_bf16 = prepare_params(params, feat_len, mxu_dtype=jnp.bfloat16)
    out_bf16 = jax.block_until_ready(siamese_forward_pallas(x1, x2, fused_bf16))
    assert out_bf16.shape == (batch,)
    assert jnp.allclose(out_bf16, ref, atol=5e-2, rtol=5e-2), (out_bf16, ref)

    # Multi-tile grid + batch-padding path (grid of 2 tiles, B not tile-aligned).
    kb1, kb2 = jax.random.split(k1)
    xb1 = jax.random.normal(kb1, (300, feat_len), jnp.float32)
    xb2 = jax.random.normal(kb2, (300, feat_len), jnp.float32)
    out_big = jax.block_until_ready(siamese_forward_pallas(xb1, xb2, fused_f32))
    ref_big = siamese_forward_ref(xb1, xb2, params)
    assert out_big.shape == (300,)
    assert jnp.allclose(out_big, ref_big, atol=1e-4, rtol=1e-4)

    print("KERNEL_OK")
</pallas_src>

<mosaic_0001>
module attributes {stable_mosaic.version = 11 : i64} {
  func.func @_siamese_kernel(%arg0: i32, %arg1: memref<128x128xf32, #tpu.memory_space<vmem>>, %arg2: memref<128x128xf32, #tpu.memory_space<vmem>>, %arg3: memref<256x256xf32, #tpu.memory_space<vmem>>, %arg4: memref<1x256xf32, #tpu.memory_space<vmem>>, %arg5: memref<256x256xf32, #tpu.memory_space<vmem>>, %arg6: memref<1x256xf32, #tpu.memory_space<vmem>>, %arg7: memref<1x256xf32, #tpu.memory_space<vmem>>, %arg8: memref<1x1xf32, #tpu.memory_space<vmem>>, %arg9: memref<1x128xf32, #tpu.memory_space<vmem>>) attributes {dimension_semantics = [#tpu.dimension_semantics<parallel>], iteration_bounds = array<i64: 1>, scalar_prefetch = 0 : i64, scratch_operands = 0 : i64, tpu.core_type = #tpu.core_type<tc>, window_params = [{transform_indices = @transform_0, window_bounds = array<i64: 128, 128>}, {transform_indices = @transform_1, window_bounds = array<i64: 128, 128>}, {pipeline_mode = #tpu.pipeline_mode<synchronous>, transform_indices = @transform_2, window_bounds = array<i64: 256, 256>}, {pipeline_mode = #tpu.pipeline_mode<synchronous>, transform_indices = @transform_3, window_bounds = array<i64: 1, 256>}, {pipeline_mode = #tpu.pipeline_mode<synchronous>, transform_indices = @transform_4, window_bounds = array<i64: 256, 256>}, {pipeline_mode = #tpu.pipeline_mode<synchronous>, transform_indices = @transform_5, window_bounds = array<i64: 1, 256>}, {pipeline_mode = #tpu.pipeline_mode<synchronous>, transform_indices = @transform_6, window_bounds = array<i64: 1, 256>}, {pipeline_mode = #tpu.pipeline_mode<synchronous>, transform_indices = @transform_7, window_bounds = array<i64: 1, 1>}, {transform_indices = @transform_8, window_bounds = array<i64: 1, 128>}]} {
    %c0 = arith.constant 0 : index
    %c0_0 = arith.constant 0 : index
    %0 = vector.load %arg1[%c0, %c0_0] : memref<128x128xf32, #tpu.memory_space<vmem>>, vector<128x128xf32>
    %c0_1 = arith.constant 0 : index
    %c0_2 = arith.constant 0 : index
    %1 = vector.load %arg2[%c0_1, %c0_2] : memref<128x128xf32, #tpu.memory_space<vmem>>, vector<128x128xf32>
    %2 = arith.subf %0, %1 : vector<128x128xf32>
    %3 = arith.mulf %2, %2 : vector<128x128xf32>
    %4 = arith.mulf %0, %1 : vector<128x128xf32>
    %5 = tpu.concatenate %3, %4 in 1 : vector<128x128xf32>, vector<128x128xf32> -> vector<128x256xf32>
    %c0_3 = arith.constant 0 : index
    %c0_4 = arith.constant 0 : index
    %6 = vector.load %arg3[%c0_3, %c0_4] : memref<256x256xf32, #tpu.memory_space<vmem>>, vector<256x256xf32>
    %cst = arith.constant dense<0.000000e+00> : vector<128x256xf32>
    %7 = tpu.matmul %5, %6, %cst {dimension_numbers = #tpu.dot_dimension_numbers<[1], [0], [0], [1], [0, 0, 1, 1], [], []>} : vector<128x256xf32>, vector<256x256xf32>, vector<128x256xf32> -> vector<128x256xf32>
    %c0_5 = arith.constant 0 : index
    %c0_6 = arith.constant 0 : index
    %8 = vector.load %arg4[%c0_5, %c0_6] : memref<1x256xf32, #tpu.memory_space<vmem>>, vector<1x256xf32>
    %9 = vector.broadcast %8 : vector<1x256xf32> to vector<128x256xf32>
    %10 = arith.addf %7, %9 : vector<128x256xf32>
    %cst_7 = arith.constant 0.000000e+00 : f32
    %11 = vector.broadcast %cst_7 : f32 to vector<128x256xf32>
    %12 = arith.maximumf %10, %11 : vector<128x256xf32>
    %c0_8 = arith.constant 0 : index
    %c0_9 = arith.constant 0 : index
    %13 = vector.load %arg5[%c0_8, %c0_9] : memref<256x256xf32, #tpu.memory_space<vmem>>, vector<256x256xf32>
    %cst_10 = arith.constant dense<0.000000e+00> : vector<128x256xf32>
    %14 = tpu.matmul %12, %13, %cst_10 {dimension_numbers = #tpu.dot_dimension_numbers<[1], [0], [0], [1], [0, 0, 1, 1], [], []>} : vector<128x256xf32>, vector<256x256xf32>, vector<128x256xf32> -> vector<128x256xf32>
    %c0_11 = arith.constant 0 : index
    %c0_12 = arith.constant 0 : index
    %15 = vector.load %arg6[%c0_11, %c0_12] : memref<1x256xf32, #tpu.memory_space<vmem>>, vector<1x256xf32>
    %16 = vector.broadcast %15 : vector<1x256xf32> to vector<128x256xf32>
    %17 = arith.addf %14, %16 : vector<128x256xf32>
    %cst_13 = arith.constant 0.000000e+00 : f32
    %18 = vector.broadcast %cst_13 : f32 to vector<128x256xf32>
    %19 = arith.maximumf %17, %18 : vector<128x256xf32>
    %c0_14 = arith.constant 0 : index
    %c0_15 = arith.constant 0 : index
    %20 = vector.load %arg7[%c0_14, %c0_15] : memref<1x256xf32, #tpu.memory_space<vmem>>, vector<1x256xf32>
    %21 = vector.shape_cast %20 : vector<1x256xf32> to vector<1x1x256xf32>
    %22 = vector.shape_cast %19 : vector<128x256xf32> to vector<1x128x256xf32>
    %23 = vector.broadcast %21 : vector<1x1x256xf32> to vector<1x128x256xf32>
    %24 = arith.mulf %22, %23 : vector<1x128x256xf32>
    %cst_16 = arith.constant dense<0.000000e+00> : vector<1x128xf32>
    %25 = vector.multi_reduction <add>, %24, %cst_16 [2] : vector<1x128x256xf32> to vector<1x128xf32>
    %26 = vector.shape_cast %25 : vector<1x128xf32> to vector<1x128x1xf32>
    %27 = tpu.iota {dimensions = array<i32: 0>} : vector<128x128xi32>
    %28 = tpu.iota {dimensions = array<i32: 1>} : vector<128x128xi32>
    %29 = arith.cmpi eq, %27, %28 : vector<128x128xi32>
    %cst_17 = arith.constant 1.000000e+00 : f32
    %cst_18 = arith.constant 0.000000e+00 : f32
    %30 = vector.broadcast %cst_17 : f32 to vector<128x128xf32>
    %31 = vector.broadcast %cst_18 : f32 to vector<128x128xf32>
    %32 = arith.select %29, %30, %31 : vector<128x128xi1>, vector<128x128xf32>
    %33 = vector.shape_cast %32 : vector<128x128xf32> to vector<1x128x128xf32>
    %34 = vector.broadcast %26 : vector<1x128x1xf32> to vector<1x128x128xf32>
    %35 = arith.mulf %34, %33 : vector<1x128x128xf32>
    %cst_19 = arith.constant dense<0.000000e+00> : vector<1x128xf32>
    %36 = vector.multi_reduction <add>, %35, %cst_19 [1] : vector<1x128x128xf32> to vector<1x128xf32>
    %c0_20 = arith.constant 0 : index
    %c0_21 = arith.constant 0 : index
    %37 = vector.load %arg8[%c0_20, %c0_21] : memref<1x1xf32, #tpu.memory_space<vmem>>, vector<1x1xf32>
    %38 = vector.broadcast %37 : vector<1x1xf32> to vector<1x128xf32>
    %39 = arith.addf %36, %38 : vector<1x128xf32>
    %c0_22 = arith.constant 0 : index
    %c0_23 = arith.constant 0 : index
    %40 = vector.load %arg9[%c0_22, %c0_23] : memref<1x128xf32, #tpu.memory_space<vmem>>, vector<1x128xf32>
    tpu.vector_store %arg9[%c0_22, %c0_23], %39 {strides = array<i32>} : memref<1x128xf32, #tpu.memory_space<vmem>>, vector<1x128xf32>,
    return
  }
  func.func @transform_0(%arg0: i32) -> (i32, i32) {
    %c0_i32 = arith.constant 0 : i32
    %c0_i32_0 = arith.constant 0 : i32
    return %arg0, %c0_i32 : i32, i32
  }
  func.func @transform_1(%arg0: i32) -> (i32, i32) {
    %c0_i32 = arith.constant 0 : i32
    %c0_i32_0 = arith.constant 0 : i32
    return %arg0, %c0_i32 : i32, i32
  }
  func.func @transform_2(%arg0: i32) -> (i32, i32) {
    %c0_i32 = arith.constant 0 : i32
    %c0_i32_0 = arith.constant 0 : i32
    %c0_i32_1 = arith.constant 0 : i32
    return %c0_i32, %c0_i32_0 : i32, i32
  }
  func.func @transform_3(%arg0: i32) -> (i32, i32) {
    %c0_i32 = arith.constant 0 : i32
    %c0_i32_0 = arith.constant 0 : i32
    %c0_i32_1 = arith.constant 0 : i32
    return %c0_i32, %c0_i32_0 : i32, i32
  }
  func.func @transform_4(%arg0: i32) -> (i32, i32) {
    %c0_i32 = arith.constant 0 : i32
    %c0_i32_0 = arith.constant 0 : i32
    %c0_i32_1 = arith.constant 0 : i32
    return %c0_i32, %c0_i32_0 : i32, i32
  }
  func.func @transform_5(%arg0: i32) -> (i32, i32) {
    %c0_i32 = arith.constant 0 : i32
    %c0_i32_0 = arith.constant 0 : i32
    %c0_i32_1 = arith.constant 0 : i32
    return %c0_i32, %c0_i32_0 : i32, i32
  }
  func.func @transform_6(%arg0: i32) -> (i32, i32) {
    %c0_i32 = arith.constant 0 : i32
    %c0_i32_0 = arith.constant 0 : i32
    %c0_i32_1 = arith.constant 0 : i32
    return %c0_i32, %c0_i32_0 : i32, i32
  }
  func.func @transform_7(%arg0: i32) -> (i32, i32) {
    %c0_i32 = arith.constant 0 : i32
    %c0_i32_0 = arith.constant 0 : i32
    %c0_i32_1 = arith.constant 0 : i32
    return %c0_i32, %c0_i32_0 : i32, i32
  }
  func.func @transform_8(%arg0: i32) -> (i32, i32) {
    %c0_i32 = arith.constant 0 : i32
    %c0_i32_0 = arith.constant 0 : i32
    return %arg0, %c0_i32 : i32, i32
  }
}

</mosaic_0001>

<llo_original>
// kernel: tpu_custom_call.1
$region0: #{tpu_custom_call.1}
  #allocation0 [shape = 'u32[]', space=smem, size = 0x4, offset = 0x4, fixed_abs, tag = 'smem constant byte address 0x4 - core index']
  #allocation1 [shape = 'u32[72,128]{1,0:T(1,128)}', space=vmem, size = 0x9000, scoped, tag = 'internal scratch']
  #allocation2 [shape = 'f32[1,1]{1,0:T(1,128)S(1)}', space=vmem, size = 0x200, scoped, tag = 'scoped memory for tpu_custom_call.1']
  %s0 = inlined_call_operand.hbm [shape: f32[128,128], index: 0, kind: input, shape index: {}]
  %s1 = inlined_call_operand.hbm [shape: f32[128,128], index: 1, kind: input, shape index: {}]
  %s2 = inlined_call_operand.hbm [shape: f32[256,256], index: 2, kind: input, shape index: {}]
  %s3 = inlined_call_operand.vmem [shape: f32[1,256], index: 3, kind: input, shape index: {}]
  %s4 = inlined_call_operand.hbm [shape: f32[256,256], index: 4, kind: input, shape index: {}]
  %s5 = inlined_call_operand.vmem [shape: f32[1,256], index: 5, kind: input, shape index: {}]
  %s6 = inlined_call_operand.vmem [shape: f32[1,256], index: 6, kind: input, shape index: {}]
  %s7 = inlined_call_operand.<no memory space> [shape: f32[1,1], index: 7, kind: input, shape index: {}]
  %s8 = inlined_call_operand.hbm [shape: f32[1,128], index: 8, kind: output, shape index: {}]
  %s9 = sld [smem:[#allocation0]]
  $region58: #{tpu_custom_call.1} parent=0
    _
  %s11 = ssub.s32 1, %s9
  %s12 = scalar_select 0, %s11, %s9
  %v13 = vstv %s7
  %14 = vst [vmem:[#allocation2] sm:$0x1] %v13
  $region1: #{tpu_custom_call.1} parent=0
    #allocation3 [shape = 'u8[65536]{0}', space=vmem, size = 0x10000, scoped, tag = 'input window, operand 0, single buffered']
    #allocation4 [shape = 's32[1]{0}', space=sflag, size = 0x4, scoped, tag = 'scoped memory for tpu_custom_call.1']
    #allocation5 [shape = 's32[1]{0}', space=sflag, size = 0x4, scoped, tag = 'scoped memory for tpu_custom_call.1']
    #allocation6 [shape = 'u8[65536]{0}', space=vmem, size = 0x10000, scoped, tag = 'input window, operand 1, single buffered']
    #allocation7 [shape = 's32[1]{0}', space=sflag, size = 0x4, scoped, tag = 'scoped memory for tpu_custom_call.1']
    #allocation8 [shape = 'u8[262144]{0}', space=vmem, size = 0x40000, scoped, tag = 'input window, operand 2, single buffered']
    #allocation9 [shape = 'u8[262144]{0}', space=vmem, size = 0x40000, scoped, tag = 'input window, operand 4, single buffered']
    #allocation10 [shape = 's32[1]{0}', space=sflag, size = 0x4, scoped, tag = 'scoped memory for tpu_custom_call.1']
    #allocation11 [shape = 'u8[512]{0}', space=vmem, size = 0x400, scoped, tag = 'output window, operand 0, single buffered']
    %15 = vsyncpa [#allocation4], 0
    %16 = vsyncpa [#allocation7], 0
    %17 = vsyncpa [#allocation10], 0
    %18 = vsyncpa [#allocation5], 0
    // Predicated region
    $region2: #{tpu_custom_call.1} parent=1 // pred_check
      _
    $region3: #{tpu_custom_call.1} parent=1 // pred_check_branch
      %20 = sbr.rel (0) target = $region5
    $region4: #{tpu_custom_call.1} parent=1 // pred_region
      %22 = vsyncadd [#allocation4], 0
      %s23 = sshll.u32 %s0, 4
      %s24 = int_to_ptr.hbm [resolvable:$true] %s23
      %s25 = sshll.u32 [#allocation3], 4
      %s26 = int_to_ptr.vmem [resolvable:$true] %s25
      %31 = dma.hbm_to_vmem [thread:$0]  %s24, 2048, %s26, [#allocation4], 128, 128, 8
    $region5: #{tpu_custom_call.1} parent=1 // pred_fallthru
      _
    // Predicated region
    $region6: #{tpu_custom_call.1} parent=1 // pred_check
      _
    $region7: #{tpu_custom_call.1} parent=1 // pred_check_branch
      %33 = sbr.rel (0) target = $region9
    $region8: #{tpu_custom_call.1} parent=1 // pred_region
      %35 = vsyncadd [#allocation7], 0
      %s36 = sshll.u32 %s1, 4
      %s37 = int_to_ptr.hbm [resolvable:$true] %s36
      %s38 = sshll.u32 [#allocation6], 4
      %s39 = int_to_ptr.vmem [resolvable:$true] %s38
      %44 = dma.hbm_to_vmem [thread:$0]  %s37, 2048, %s39, [#allocation7], 128, 128, 8
    $region9: #{tpu_custom_call.1} parent=1 // pred_fallthru
      _
    // Predicated region
    $region10: #{tpu_custom_call.1} parent=1 // pred_check
      _
    $region11: #{tpu_custom_call.1} parent=1 // pred_check_branch
      %46 = sbr.rel (0) target = $region13
    $region12: #{tpu_custom_call.1} parent=1 // pred_region
      %48 = vsyncadd [#allocation7], 0
      %s49 = sshll.u32 %s2, 4
      %s50 = int_to_ptr.hbm [resolvable:$true] %s49
      %s51 = sshll.u32 [#allocation8], 4
      %s52 = int_to_ptr.vmem [resolvable:$true] %s51
      %57 = dma.hbm_to_vmem [thread:$0]  %s50, 8192, %s52, [#allocation7], 256, 256, 16
    $region13: #{tpu_custom_call.1} parent=1 // pred_fallthru
      _
    // Predicated region
    $region14: #{tpu_custom_call.1} parent=1 // pred_check
      _
    $region15: #{tpu_custom_call.1} parent=1 // pred_check_branch
      %59 = sbr.rel (0) target = $region17
    $region16: #{tpu_custom_call.1} parent=1 // pred_region
      _
    $region17: #{tpu_custom_call.1} parent=1 // pred_fallthru
      _
    // Predicated region
    $region18: #{tpu_custom_call.1} parent=1 // pred_check
      _
    $region19: #{tpu_custom_call.1} parent=1 // pred_check_branch
      %61 = sbr.rel (0) target = $region21
    $region20: #{tpu_custom_call.1} parent=1 // pred_region
      %63 = vsyncadd [#allocation10], 0
      %s64 = sshll.u32 %s4, 4
      %s65 = int_to_ptr.hbm [resolvable:$true] %s64
      %s66 = sshll.u32 [#allocation9], 4
      %s67 = int_to_ptr.vmem [resolvable:$true] %s66
      %72 = dma.hbm_to_vmem [thread:$0]  %s65, 8192, %s67, [#allocation10], 256, 256, 16
    $region21: #{tpu_custom_call.1} parent=1 // pred_fallthru
      _
    // Predicated region
    $region22: #{tpu_custom_call.1} parent=1 // pred_check
      _
    $region23: #{tpu_custom_call.1} parent=1 // pred_check_branch
      %74 = sbr.rel (0) target = $region25
    $region24: #{tpu_custom_call.1} parent=1 // pred_region
      _
    $region25: #{tpu_custom_call.1} parent=1 // pred_fallthru
      _
    // Predicated region
    $region26: #{tpu_custom_call.1} parent=1 // pred_check
      _
    $region27: #{tpu_custom_call.1} parent=1 // pred_check_branch
      %76 = sbr.rel (0) target = $region29
    $region28: #{tpu_custom_call.1} parent=1 // pred_region
      _
    $region29: #{tpu_custom_call.1} parent=1 // pred_fallthru
      _
    // Predicated region
    $region30: #{tpu_custom_call.1} parent=1 // pred_check
      _
    $region31: #{tpu_custom_call.1} parent=1 // pred_check_branch
      %78 = sbr.rel (0) target = $region33
    $region32: #{tpu_custom_call.1} parent=1 // pred_region
      _
    $region33: #{tpu_custom_call.1} parent=1 // pred_fallthru
      _
    // Predicated region
    $region34: #{tpu_custom_call.1} parent=1 // pred_check
      _
    $region35: #{tpu_custom_call.1} parent=1 // pred_check_branch
      %80 = sbr.rel (0) target = $region37
    $region36: #{tpu_custom_call.1} parent=1 // pred_region
      %82 = dma.done [#allocation4], 2048
    $region37: #{tpu_custom_call.1} parent=1 // pred_fallthru
      _
    // Predicated region
    $region38: #{tpu_custom_call.1} parent=1 // pred_check
      _
    $region39: #{tpu_custom_call.1} parent=1 // pred_check_branch
      %84 = sbr.rel (0) target = $region41
    $region40: #{tpu_custom_call.1} parent=1 // pred_region
      %86 = dma.done [#allocation7], 2048
    $region41: #{tpu_custom_call.1} parent=1 // pred_fallthru
      _
    // Predicated region
    $region42: #{tpu_custom_call.1} parent=1 // pred_check
      _
    $region43: #{tpu_custom_call.1} parent=1 // pred_check_branch
      %88 = sbr.rel (0) target = $region45
    $region44: #{tpu_custom_call.1} parent=1 // pred_region
      %90 = dma.done [#allocation7], 8192
    $region45: #{tpu_custom_call.1} parent=1 // pred_fallthru
      _
    // Predicated region
    $region46: #{tpu_custom_call.1} parent=1 // pred_check
      _
    $region47: #{tpu_custom_call.1} parent=1 // pred_check_branch
      %92 = sbr.rel (0) target = $region49
    $region48: #{tpu_custom_call.1} parent=1 // pred_region
      %94 = dma.done [#allocation10], 8192
    $region49: #{tpu_custom_call.1} parent=1 // pred_fallthru
      _
    %v95 = vld [vmem:[#allocation3] sm:$0xff]
    %v96 = vld [vmem:[#allocation3 + $0x8] sm:$0xff]
    %v97 = vld [vmem:[#allocation3 + $0x10] sm:$0xff]
    %v98 = vld [vmem:[#allocation3 + $0x18] sm:$0xff]
    %v99 = vld [vmem:[#allocation3 + $0x20] sm:$0xff]
    %v100 = vld [vmem:[#allocation3 + $0x28] sm:$0xff]
    %v101 = vld [vmem:[#allocation3 + $0x30] sm:$0xff]
    %v102 = vld [vmem:[#allocation3 + $0x38] sm:$0xff]
    %v103 = vld [vmem:[#allocation3 + $0x40] sm:$0xff]
    %v104 = vld [vmem:[#allocation3 + $0x48] sm:$0xff]
    %v105 = vld [vmem:[#allocation3 + $0x50] sm:$0xff]
    %v106 = vld [vmem:[#allocation3 + $0x58] sm:$0xff]
    %v107 = vld [vmem:[#allocation3 + $0x60] sm:$0xff]
    %v108 = vld [vmem:[#allocation3 + $0x68] sm:$0xff]
    %v109 = vld [vmem:[#allocation3 + $0x70] sm:$0xff]
    %v110 = vld [vmem:[#allocation3 + $0x78] sm:$0xff]
    %v111 = vld [vmem:[#allocation6] sm:$0xff]
    %v112 = vld [vmem:[#allocation6 + $0x8] sm:$0xff]
    %v113 = vld [vmem:[#allocation6 + $0x10] sm:$0xff]
    %v114 = vld [vmem:[#allocation6 + $0x18] sm:$0xff]
    %v115 = vld [vmem:[#allocation6 + $0x20] sm:$0xff]
    %v116 = vld [vmem:[#allocation6 + $0x28] sm:$0xff]
    %v117 = vld [vmem:[#allocation6 + $0x30] sm:$0xff]
    %v118 = vld [vmem:[#allocation6 + $0x38] sm:$0xff]
    %v119 = vld [vmem:[#allocation6 + $0x40] sm:$0xff]
    %v120 = vld [vmem:[#allocation6 + $0x48] sm:$0xff]
    %v121 = vld [vmem:[#allocation6 + $0x50] sm:$0xff]
    %v122 = vld [vmem:[#allocation6 + $0x58] sm:$0xff]
    %v123 = vld [vmem:[#allocation6 + $0x60] sm:$0xff]
    %v124 = vld [vmem:[#allocation6 + $0x68] sm:$0xff]
    %v125 = vld [vmem:[#allocation6 + $0x70] sm:$0xff]
    %v126 = vld [vmem:[#allocation6 + $0x78] sm:$0xff]
    %v127 = vsub.f32 %v95, %v111
    %v128 = vsub.f32 %v96, %v112
    %v129 = vsub.f32 %v97, %v113
    %v130 = vsub.f32 %v98, %v114
    %v131 = vsub.f32 %v99, %v115
    %v132 = vsub.f32 %v100, %v116
    %v133 = vsub.f32 %v101, %v117
    %v134 = vsub.f32 %v102, %v118
    %v135 = vsub.f32 %v103, %v119
    %v136 = vsub.f32 %v104, %v120
    %v137 = vsub.f32 %v105, %v121
    %v138 = vsub.f32 %v106, %v122
    %v139 = vsub.f32 %v107, %v123
    %v140 = vsub.f32 %v108, %v124
    %v141 = vsub.f32 %v109, %v125
    %v142 = vsub.f32 %v110, %v126
    %v143 = vmul.f32 %v127, %v127
    %v144 = vmul.f32 %v128, %v128
    %v145 = vmul.f32 %v129, %v129
    %v146 = vmul.f32 %v130, %v130
    %v147 = vmul.f32 %v131, %v131
    %v148 = vmul.f32 %v132, %v132
    %v149 = vmul.f32 %v133, %v133
    %v150 = vmul.f32 %v134, %v134
    %v151 = vmul.f32 %v135, %v135
    %v152 = vmul.f32 %v136, %v136
    %v153 = vmul.f32 %v137, %v137
    %v154 = vmul.f32 %v138, %v138
    %v155 = vmul.f32 %v139, %v139
    %v156 = vmul.f32 %v140, %v140
    %v157 = vmul.f32 %v141, %v141
    %v158 = vmul.f32 %v142, %v142
    %v159 = vmul.f32 %v95, %v111
    %v160 = vmul.f32 %v96, %v112
    %v161 = vmul.f32 %v97, %v113
    %v162 = vmul.f32 %v98, %v114
    %v163 = vmul.f32 %v99, %v115
    %v164 = vmul.f32 %v100, %v116
    %v165 = vmul.f32 %v101, %v117
    %v166 = vmul.f32 %v102, %v118
    %v167 = vmul.f32 %v103, %v119
    %v168 = vmul.f32 %v104, %v120
    %v169 = vmul.f32 %v105, %v121
    %v170 = vmul.f32 %v106, %v122
    %v171 = vmul.f32 %v107, %v123
    %v172 = vmul.f32 %v108, %v124
    %v173 = vmul.f32 %v109, %v125
    %v174 = vmul.f32 %v110, %v126
    %v175 = vld [vmem:[#allocation8] sm:$0xff]
    %v176 = vld [vmem:[#allocation8 + $0x8] sm:$0xff]
    %v177 = vld [vmem:[#allocation8 + $0x10] sm:$0xff]
    %v178 = vld [vmem:[#allocation8 + $0x18] sm:$0xff]
    %v179 = vld [vmem:[#allocation8 + $0x20] sm:$0xff]
    %v180 = vld [vmem:[#allocation8 + $0x28] sm:$0xff]
    %v181 = vld [vmem:[#allocation8 + $0x30] sm:$0xff]
    %v182 = vld [vmem:[#allocation8 + $0x38] sm:$0xff]
    %v183 = vld [vmem:[#allocation8 + $0x40] sm:$0xff]
    %v184 = vld [vmem:[#allocation8 + $0x48] sm:$0xff]
    %v185 = vld [vmem:[#allocation8 + $0x50] sm:$0xff]
    %v186 = vld [vmem:[#allocation8 + $0x58] sm:$0xff]
    %v187 = vld [vmem:[#allocation8 + $0x60] sm:$0xff]
    %v188 = vld [vmem:[#allocation8 + $0x68] sm:$0xff]
    %v189 = vld [vmem:[#allocation8 + $0x70] sm:$0xff]
    %v190 = vld [vmem:[#allocation8 + $0x78] sm:$0xff]
    %v191 = vld [vmem:[#allocation8 + $0x80] sm:$0xff]
    %v192 = vld [vmem:[#allocation8 + $0x88] sm:$0xff]
    %v193 = vld [vmem:[#allocation8 + $0x90] sm:$0xff]
    %v194 = vld [vmem:[#allocation8 + $0x98] sm:$0xff]
    %v195 = vld [vmem:[#allocation8 + $0xa0] sm:$0xff]
    %v196 = vld [vmem:[#allocation8 + $0xa8] sm:$0xff]
    %v197 = vld [vmem:[#allocation8 + $0xb0] sm:$0xff]
    %v198 = vld [vmem:[#allocation8 + $0xb8] sm:$0xff]
    %v199 = vld [vmem:[#allocation8 + $0xc0] sm:$0xff]
    %v200 = vld [vmem:[#allocation8 + $0xc8] sm:$0xff]
    %v201 = vld [vmem:[#allocation8 + $0xd0] sm:$0xff]
    %v202 = vld [vmem:[#allocation8 + $0xd8] sm:$0xff]
    %v203 = vld [vmem:[#allocation8 + $0xe0] sm:$0xff]
    %v204 = vld [vmem:[#allocation8 + $0xe8] sm:$0xff]
    %v205 = vld [vmem:[#allocation8 + $0xf0] sm:$0xff]
    %v206 = vld [vmem:[#allocation8 + $0xf8] sm:$0xff]
    %v207 = vld [vmem:[#allocation8 + $0x100] sm:$0xff]
    %v208 = vld [vmem:[#allocation8 + $0x108] sm:$0xff]
    %v209 = vld [vmem:[#allocation8 + $0x110] sm:$0xff]
    %v210 = vld [vmem:[#allocation8 + $0x118] sm:$0xff]
    %v211 = vld [vmem:[#allocation8 + $0x120] sm:$0xff]
    %v212 = vld [vmem:[#allocation8 + $0x128] sm:$0xff]
    %v213 = vld [vmem:[#allocation8 + $0x130] sm:$0xff]
    %v214 = vld [vmem:[#allocation8 + $0x138] sm:$0xff]
    %v215 = vld [vmem:[#allocation8 + $0x140] sm:$0xff]
    %v216 = vld [vmem:[#allocation8 + $0x148] sm:$0xff]
    %v217 = vld [vmem:[#allocation8 + $0x150] sm:$0xff]
    %v218 = vld [vmem:[#allocation8 + $0x158] sm:$0xff]
    %v219 = vld [vmem:[#allocation8 + $0x160] sm:$0xff]
    %v220 = vld [vmem:[#allocation8 + $0x168] sm:$0xff]
    %v221 = vld [vmem:[#allocation8 + $0x170] sm:$0xff]
    %v222 = vld [vmem:[#allocation8 + $0x178] sm:$0xff]
    %v223 = vld [vmem:[#allocation8 + $0x180] sm:$0xff]
    %v224 = vld [vmem:[#allocation8 + $0x188] sm:$0xff]
    %v225 = vld [vmem:[#allocation8 + $0x190] sm:$0xff]
    %v226 = vld [vmem:[#allocation8 + $0x198] sm:$0xff]
    %v227 = vld [vmem:[#allocation8 + $0x1a0] sm:$0xff]
    %v228 = vld [vmem:[#allocation8 + $0x1a8] sm:$0xff]
    %v229 = vld [vmem:[#allocation8 + $0x1b0] sm:$0xff]
    %v230 = vld [vmem:[#allocation8 + $0x1b8] sm:$0xff]
    %v231 = vld [vmem:[#allocation8 + $0x1c0] sm:$0xff]
    %v232 = vld [vmem:[#allocation8 + $0x1c8] sm:$0xff]
    %v233 = vld [vmem:[#allocation8 + $0x1d0] sm:$0xff]
    %v234 = vld [vmem:[#allocation8 + $0x1d8] sm:$0xff]
    %v235 = vld [vmem:[#allocation8 + $0x1e0] sm:$0xff]
    %v236 = vld [vmem:[#allocation8 + $0x1e8] sm:$0xff]
    %v237 = vld [vmem:[#allocation8 + $0x1f0] sm:$0xff]
    %v238 = vld [vmem:[#allocation8 + $0x1f8] sm:$0xff]
    %v239 = vld [vmem:[%s3] sm:$0x3]
    %v241 = vperm.slane %v239, 0
    %v242 = vperm.slane %v239, 1
    %245 = vmatpush.msra.mxu0 %v205
    %246 = vmatpush.msra.mxu0 %v203
    %247 = vmatpush.msra.mxu0 %v201
    %248 = vmatpush.msra.mxu0 %v199
    %249 = vmatpush.msra.mxu0 %v197
    %250 = vmatpush.msra.mxu0 %v195
    %251 = vmatpush.msra.mxu0 %v193
    %252 = vmatpush.msra.mxu0 %v191
    %253 = vmatpush.msra.mxu0 %v189
    %254 = vmatpush.msra.mxu0 %v187
    %255 = vmatpush.msra.mxu0 %v185
    %256 = vmatpush.msra.mxu0 %v183
    %257 = vmatpush.msra.mxu0 %v181
    %258 = vmatpush.msra.mxu0 %v179
    %259 = vmatpush.msra.mxu0 %v177
    %260 = vmatpush.msra.mxu0 %v175
    %261 = vmatmul.f32.gmra.mxu0 %v143
    %v262 = vpop.f32.mrf.mxu0
    %v263 = vadd.f32 %v241, %v262
    %264 = vmatmul.f32.gmra.mxu0 %v144
    %v265 = vpop.f32.mrf.mxu0
    %v266 = vadd.f32 %v241, %v265
    %267 = vmatmul.f32.gmra.mxu0 %v145
    %v268 = vpop.f32.mrf.mxu0
    %v269 = vadd.f32 %v241, %v268
    %270 = vmatmul.f32.gmra.mxu0 %v146
    %v271 = vpop.f32.mrf.mxu0
    %v272 = vadd.f32 %v241, %v271
    %273 = vmatmul.f32.gmra.mxu0 %v147
    %v274 = vpop.f32.mrf.mxu0
    %v275 = vadd.f32 %v241, %v274
    %276 = vmatmul.f32.gmra.mxu0 %v148
    %v277 = vpop.f32.mrf.mxu0
    %v278 = vadd.f32 %v241, %v277
    %279 = vmatmul.f32.gmra.mxu0 %v149
    %v280 = vpop.f32.mrf.mxu0
    %v281 = vadd.f32 %v241, %v280
    %282 = vmatmul.f32.gmra.mxu0 %v150
    %v283 = vpop.f32.mrf.mxu0
    %v284 = vadd.f32 %v241, %v283
    %285 = vmatmul.f32.gmra.mxu0 %v151
    %v286 = vpop.f32.mrf.mxu0
    %v287 = vadd.f32 %v241, %v286
    %288 = vmatmul.f32.gmra.mxu0 %v152
    %v289 = vpop.f32.mrf.mxu0
    %v290 = vadd.f32 %v241, %v289
    %291 = vmatmul.f32.gmra.mxu0 %v153
    %v292 = vpop.f32.mrf.mxu0
    %v293 = vadd.f32 %v241, %v292
    %294 = vmatmul.f32.gmra.mxu0 %v154
    %v295 = vpop.f32.mrf.mxu0
    %v296 = vadd.f32 %v241, %v295
    %297 = vmatmul.f32.gmra.mxu0 %v155
    %v298 = vpop.f32.mrf.mxu0
    %v299 = vadd.f32 %v241, %v298
    %300 = vmatmul.f32.gmra.mxu0 %v156
    %v301 = vpop.f32.mrf.mxu0
    %v302 = vadd.f32 %v241, %v301
    %303 = vmatmul.f32.gmra.mxu0 %v157
    %v304 = vpop.f32.mrf.mxu0
    %v305 = vadd.f32 %v241, %v304
    %306 = vmatmul.f32.gmra.mxu0 %v158
    %v307 = vpop.f32.mrf.mxu0
    %v308 = vadd.f32 %v241, %v307
    %309 = vdwg.mxu0
    %310 = vmatpush.msra.mxu0 %v237
    %311 = vmatpush.msra.mxu0 %v235
    %312 = vmatpush.msra.mxu0 %v233
    %313 = vmatpush.msra.mxu0 %v231
    %314 = vmatpush.msra.mxu0 %v229
    %315 = vmatpush.msra.mxu0 %v227
    %316 = vmatpush.msra.mxu0 %v225
    %317 = vmatpush.msra.mxu0 %v223
    %318 = vmatpush.msra.mxu0 %v221
    %319 = vmatpush.msra.mxu0 %v219
    %320 = vmatpush.msra.mxu0 %v217
    %321 = vmatpush.msra.mxu0 %v215
    %322 = vmatpush.msra.mxu0 %v213
    %323 = vmatpush.msra.mxu0 %v211
    %324 = vmatpush.msra.mxu0 %v209
    %325 = vmatpush.msra.mxu0 %v207
    %326 = vmatmul.f32.gmra.mxu0 %v159
    %v327 = vpop.f32.mrf.mxu0
    %v328 = vadd.f32 %v263, %v327
    %329 = vmatmul.f32.gmra.mxu0 %v160
    %v330 = vpop.f32.mrf.mxu0
    %v331 = vadd.f32 %v266, %v330
    %332 = vmatmul.f32.gmra.mxu0 %v161
    %v333 = vpop.f32.mrf.mxu0
    %v334 = vadd.f32 %v269, %v333
    %335 = vmatmul.f32.gmra.mxu0 %v162
    %v336 = vpop.f32.mrf.mxu0
    %v337 = vadd.f32 %v272, %v336
    %338 = vmatmul.f32.gmra.mxu0 %v163
    %v339 = vpop.f32.mrf.mxu0
    %v340 = vadd.f32 %v275, %v339
    %341 = vmatmul.f32.gmra.mxu0 %v164
    %v342 = vpop.f32.mrf.mxu0
    %v343 = vadd.f32 %v278, %v342
    %344 = vmatmul.f32.gmra.mxu0 %v165
    %v345 = vpop.f32.mrf.mxu0
    %v346 = vadd.f32 %v281, %v345
    %347 = vmatmul.f32.gmra.mxu0 %v166
    %v348 = vpop.f32.mrf.mxu0
    %v349 = vadd.f32 %v284, %v348
    %350 = vmatmul.f32.gmra.mxu0 %v167
    %v351 = vpop.f32.mrf.mxu0
    %v352 = vadd.f32 %v287, %v351
    %353 = vmatmul.f32.gmra.mxu0 %v168
    %v354 = vpop.f32.mrf.mxu0
    %v355 = vadd.f32 %v290, %v354
    %356 = vmatmul.f32.gmra.mxu0 %v169
    %v357 = vpop.f32.mrf.mxu0
    %v358 = vadd.f32 %v293, %v357
    %359 = vmatmul.f32.gmra.mxu0 %v170
    %v360 = vpop.f32.mrf.mxu0
    %v361 = vadd.f32 %v296, %v360
    %362 = vmatmul.f32.gmra.mxu0 %v171
    %v363 = vpop.f32.mrf.mxu0
    %v364 = vadd.f32 %v299, %v363
    %365 = vmatmul.f32.gmra.mxu0 %v172
    %v366 = vpop.f32.mrf.mxu0
    %v367 = vadd.f32 %v302, %v366
    %368 = vmatmul.f32.gmra.mxu0 %v173
    %v369 = vpop.f32.mrf.mxu0
    %v370 = vadd.f32 %v305, %v369
    %371 = vmatmul.f32.gmra.mxu0 %v174
    %v372 = vpop.f32.mrf.mxu0
    %v373 = vadd.f32 %v308, %v372
    %374 = vdwg.mxu0
    %375 = vmatpush.msra.mxu0 %v206
    %376 = vmatpush.msra.mxu0 %v204
    %377 = vmatpush.msra.mxu0 %v202
    %378 = vmatpush.msra.mxu0 %v200
    %379 = vmatpush.msra.mxu0 %v198
    %380 = vmatpush.msra.mxu0 %v196
    %381 = vmatpush.msra.mxu0 %v194
    %382 = vmatpush.msra.mxu0 %v192
    %383 = vmatpush.msra.mxu0 %v190
    %384 = vmatpush.msra.mxu0 %v188
    %385 = vmatpush.msra.mxu0 %v186
    %386 = vmatpush.msra.mxu0 %v184
    %387 = vmatpush.msra.mxu0 %v182
    %388 = vmatpush.msra.mxu0 %v180
    %389 = vmatpush.msra.mxu0 %v178
    %390 = vmatpush.msra.mxu0 %v176
    %391 = vmatmul.f32.gmra.mxu0 %v143
    %v392 = vpop.f32.mrf.mxu0
    %v393 = vadd.f32 %v242, %v392
    %394 = vmatmul.f32.gmra.mxu0 %v144
    %v395 = vpop.f32.mrf.mxu0
    %v396 = vadd.f32 %v242, %v395
    %397 = vmatmul.f32.gmra.mxu0 %v145
    %v398 = vpop.f32.mrf.mxu0
    %v399 = vadd.f32 %v242, %v398
    %400 = vmatmul.f32.gmra.mxu0 %v146
    %v401 = vpop.f32.mrf.mxu0
    %v402 = vadd.f32 %v242, %v401
    %403 = vmatmul.f32.gmra.mxu0 %v147
    %v404 = vpop.f32.mrf.mxu0
    %v405 = vadd.f32 %v242, %v404
    %406 = vmatmul.f32.gmra.mxu0 %v148
    %v407 = vpop.f32.mrf.mxu0
    %v408 = vadd.f32 %v242, %v407
    %409 = vmatmul.f32.gmra.mxu0 %v149
    %v410 = vpop.f32.mrf.mxu0
    %v411 = vadd.f32 %v242, %v410
    %412 = vmatmul.f32.gmra.mxu0 %v150
    %v413 = vpop.f32.mrf.mxu0
    %v414 = vadd.f32 %v242, %v413
    %415 = vmatmul.f32.gmra.mxu0 %v151
    %v416 = vpop.f32.mrf.mxu0
    %v417 = vadd.f32 %v242, %v416
    %418 = vmatmul.f32.gmra.mxu0 %v152
    %v419 = vpop.f32.mrf.mxu0
    %v420 = vadd.f32 %v242, %v419
    %421 = vmatmul.f32.gmra.mxu0 %v153
    %v422 = vpop.f32.mrf.mxu0
    %v423 = vadd.f32 %v242, %v422
    %424 = vmatmul.f32.gmra.mxu0 %v154
    %v425 = vpop.f32.mrf.mxu0
    %v426 = vadd.f32 %v242, %v425
    %427 = vmatmul.f32.gmra.mxu0 %v155
    %v428 = vpop.f32.mrf.mxu0
    %v429 = vadd.f32 %v242, %v428
    %430 = vmatmul.f32.gmra.mxu0 %v156
    %v431 = vpop.f32.mrf.mxu0
    %v432 = vadd.f32 %v242, %v431
    %433 = vmatmul.f32.gmra.mxu0 %v157
    %v434 = vpop.f32.mrf.mxu0
    %v435 = vadd.f32 %v242, %v434
    %436 = vmatmul.f32.gmra.mxu0 %v158
    %v437 = vpop.f32.mrf.mxu0
    %v438 = vadd.f32 %v242, %v437
    %439 = vdwg.mxu0
    %440 = vmatpush.msra.mxu0 %v238
    %441 = vmatpush.msra.mxu0 %v236
    %442 = vmatpush.msra.mxu0 %v234
    %443 = vmatpush.msra.mxu0 %v232
    %444 = vmatpush.msra.mxu0 %v230
    %445 = vmatpush.msra.mxu0 %v228
    %446 = vmatpush.msra.mxu0 %v226
    %447 = vmatpush.msra.mxu0 %v224
    %448 = vmatpush.msra.mxu0 %v222
    %449 = vmatpush.msra.mxu0 %v220
    %450 = vmatpush.msra.mxu0 %v218
    %451 = vmatpush.msra.mxu0 %v216
    %452 = vmatpush.msra.mxu0 %v214
    %453 = vmatpush.msra.mxu0 %v212
    %454 = vmatpush.msra.mxu0 %v210
    %455 = vmatpush.msra.mxu0 %v208
    %456 = vmatmul.f32.gmra.mxu0 %v159
    %v457 = vpop.f32.mrf.mxu0
    %v458 = vadd.f32 %v393, %v457
    %459 = vmatmul.f32.gmra.mxu0 %v160
    %v460 = vpop.f32.mrf.mxu0
    %v461 = vadd.f32 %v396, %v460
    %462 = vmatmul.f32.gmra.mxu0 %v161
    %v463 = vpop.f32.mrf.mxu0
    %v464 = vadd.f32 %v399, %v463
    %465 = vmatmul.f32.gmra.mxu0 %v162
    %v466 = vpop.f32.mrf.mxu0
    %v467 = vadd.f32 %v402, %v466
    %468 = vmatmul.f32.gmra.mxu0 %v163
    %v469 = vpop.f32.mrf.mxu0
    %v470 = vadd.f32 %v405, %v469
    %471 = vmatmul.f32.gmra.mxu0 %v164
    %v472 = vpop.f32.mrf.mxu0
    %v473 = vadd.f32 %v408, %v472
    %474 = vmatmul.f32.gmra.mxu0 %v165
    %v475 = vpop.f32.mrf.mxu0
    %v476 = vadd.f32 %v411, %v475
    %477 = vmatmul.f32.gmra.mxu0 %v166
    %v478 = vpop.f32.mrf.mxu0
    %v479 = vadd.f32 %v414, %v478
    %480 = vmatmul.f32.gmra.mxu0 %v167
    %v481 = vpop.f32.mrf.mxu0
    %v482 = vadd.f32 %v417, %v481
    %483 = vmatmul.f32.gmra.mxu0 %v168
    %v484 = vpop.f32.mrf.mxu0
    %v485 = vadd.f32 %v420, %v484
    %486 = vmatmul.f32.gmra.mxu0 %v169
    %v487 = vpop.f32.mrf.mxu0
    %v488 = vadd.f32 %v423, %v487
    %489 = vmatmul.f32.gmra.mxu0 %v170
    %v490 = vpop.f32.mrf.mxu0
    %v491 = vadd.f32 %v426, %v490
    %492 = vmatmul.f32.gmra.mxu0 %v171
    %v493 = vpop.f32.mrf.mxu0
    %v494 = vadd.f32 %v429, %v493
    %495 = vmatmul.f32.gmra.mxu0 %v172
    %v496 = vpop.f32.mrf.mxu0
    %v497 = vadd.f32 %v432, %v496
    %498 = vmatmul.f32.gmra.mxu0 %v173
    %v499 = vpop.f32.mrf.mxu0
    %v500 = vadd.f32 %v435, %v499
    %501 = vmatmul.f32.gmra.mxu0 %v174
    %v502 = vpop.f32.mrf.mxu0
    %v503 = vadd.f32 %v438, %v502
    %504 = vdwg.mxu0
    %v505 = vmax.f32 %v328, 0.0
    %v506 = vmax.f32 %v458, 0.0
    %v507 = vmax.f32 %v331, 0.0
    %v508 = vmax.f32 %v461, 0.0
    %v509 = vmax.f32 %v334, 0.0
    %v510 = vmax.f32 %v464, 0.0
    %v511 = vmax.f32 %v337, 0.0
    %v512 = vmax.f32 %v467, 0.0
    %v513 = vmax.f32 %v340, 0.0
    %v514 = vmax.f32 %v470, 0.0
    %v515 = vmax.f32 %v343, 0.0
    %v516 = vmax.f32 %v473, 0.0
    %v517 = vmax.f32 %v346, 0.0
    %v518 = vmax.f32 %v476, 0.0
    %v519 = vmax.f32 %v349, 0.0
    %v520 = vmax.f32 %v479, 0.0
    %v521 = vmax.f32 %v352, 0.0
    %v522 = vmax.f32 %v482, 0.0
    %v523 = vmax.f32 %v355, 0.0
    %v524 = vmax.f32 %v485, 0.0
    %v525 = vmax.f32 %v358, 0.0
    %v526 = vmax.f32 %v488, 0.0
    %v527 = vmax.f32 %v361, 0.0
    %v528 = vmax.f32 %v491, 0.0
    %v529 = vmax.f32 %v364, 0.0
    %v530 = vmax.f32 %v494, 0.0
    %v531 = vmax.f32 %v367, 0.0
    %v532 = vmax.f32 %v497, 0.0
    %v533 = vmax.f32 %v370, 0.0
    %v534 = vmax.f32 %v500, 0.0
    %v535 = vmax.f32 %v373, 0.0
    %v536 = vmax.f32 %v503, 0.0
    %v537 = vld [vmem:[#allocation9] sm:$0xff]
    %v538 = vld [vmem:[#allocation9 + $0x8] sm:$0xff]
    %v539 = vld [vmem:[#allocation9 + $0x10] sm:$0xff]
    %v540 = vld [vmem:[#allocation9 + $0x18] sm:$0xff]
    %v541 = vld [vmem:[#allocation9 + $0x20] sm:$0xff]
    %v542 = vld [vmem:[#allocation9 + $0x28] sm:$0xff]
    %v543 = vld [vmem:[#allocation9 + $0x30] sm:$0xff]
    %v544 = vld [vmem:[#allocation9 + $0x38] sm:$0xff]
    %v545 = vld [vmem:[#allocation9 + $0x40] sm:$0xff]
    %v546 = vld [vmem:[#allocation9 + $0x48] sm:$0xff]
    %v547 = vld [vmem:[#allocation9 + $0x50] sm:$0xff]
    %v548 = vld [vmem:[#allocation9 + $0x58] sm:$0xff]
    %v549 = vld [vmem:[#allocation9 + $0x60] sm:$0xff]
    %v550 = vld [vmem:[#allocation9 + $0x68] sm:$0xff]
    %v551 = vld [vmem:[#allocation9 + $0x70] sm:$0xff]
    %v552 = vld [vmem:[#allocation9 + $0x78] sm:$0xff]
    %v553 = vld [vmem:[#allocation9 + $0x80] sm:$0xff]
    %v554 = vld [vmem:[#allocation9 + $0x88] sm:$0xff]
    %v555 = vld [vmem:[#allocation9 + $0x90] sm:$0xff]
    %v556 = vld [vmem:[#allocation9 + $0x98] sm:$0xff]
    %v557 = vld [vmem:[#allocation9 + $0xa0] sm:$0xff]
    %v558 = vld [vmem:[#allocation9 + $0xa8] sm:$0xff]
    %v559 = vld [vmem:[#allocation9 + $0xb0] sm:$0xff]
    %v560 = vld [vmem:[#allocation9 + $0xb8] sm:$0xff]
    %v561 = vld [vmem:[#allocation9 + $0xc0] sm:$0xff]
    %v562 = vld [vmem:[#allocation9 + $0xc8] sm:$0xff]
    %v563 = vld [vmem:[#allocation9 + $0xd0] sm:$0xff]
    %v564 = vld [vmem:[#allocation9 + $0xd8] sm:$0xff]
    %v565 = vld [vmem:[#allocation9 + $0xe0] sm:$0xff]
    %v566 = vld [vmem:[#allocation9 + $0xe8] sm:$0xff]
    %v567 = vld [vmem:[#allocation9 + $0xf0] sm:$0xff]
    %v568 = vld [vmem:[#allocation9 + $0xf8] sm:$0xff]
    %v569 = vld [vmem:[#allocation9 + $0x100] sm:$0xff]
    %v570 = vld [vmem:[#allocation9 + $0x108] sm:$0xff]
    %v571 = vld [vmem:[#allocation9 + $0x110] sm:$0xff]
    %v572 = vld [vmem:[#allocation9 + $0x118] sm:$0xff]
    %v573 = vld [vmem:[#allocation9 + $0x120] sm:$0xff]
    %v574 = vld [vmem:[#allocation9 + $0x128] sm:$0xff]
    %v575 = vld [vmem:[#allocation9 + $0x130] sm:$0xff]
    %v576 = vld [vmem:[#allocation9 + $0x138] sm:$0xff]
    %v577 = vld [vmem:[#allocation9 + $0x140] sm:$0xff]
    %v578 = vld [vmem:[#allocation9 + $0x148] sm:$0xff]
    %v579 = vld [vmem:[#allocation9 + $0x150] sm:$0xff]
    %v580 = vld [vmem:[#allocation9 + $0x158] sm:$0xff]
    %v581 = vld [vmem:[#allocation9 + $0x160] sm:$0xff]
    %v582 = vld [vmem:[#allocation9 + $0x168] sm:$0xff]
    %v583 = vld [vmem:[#allocation9 + $0x170] sm:$0xff]
    %v584 = vld [vmem:[#allocation9 + $0x178] sm:$0xff]
    %v585 = vld [vmem:[#allocation9 + $0x180] sm:$0xff]
    %v586 = vld [vmem:[#allocation9 + $0x188] sm:$0xff]
    %v587 = vld [vmem:[#allocation9 + $0x190] sm:$0xff]
    %v588 = vld [vmem:[#allocation9 + $0x198] sm:$0xff]
    %v589 = vld [vmem:[#allocation9 + $0x1a0] sm:$0xff]
    %v590 = vld [vmem:[#allocation9 + $0x1a8] sm:$0xff]
    %v591 = vld [vmem:[#allocation9 + $0x1b0] sm:$0xff]
    %v592 = vld [vmem:[#allocation9 + $0x1b8] sm:$0xff]
    %v593 = vld [vmem:[#allocation9 + $0x1c0] sm:$0xff]
    %v594 = vld [vmem:[#allocation9 + $0x1c8] sm:$0xff]
    %v595 = vld [vmem:[#allocation9 + $0x1d0] sm:$0xff]
    %v596 = vld [vmem:[#allocation9 + $0x1d8] sm:$0xff]
    %v597 = vld [vmem:[#allocation9 + $0x1e0] sm:$0xff]
    %v598 = vld [vmem:[#allocation9 + $0x1e8] sm:$0xff]
    %v599 = vld [vmem:[#allocation9 + $0x1f0] sm:$0xff]
    %v600 = vld [vmem:[#allocation9 + $0x1f8] sm:$0xff]
    %v601 = vld [vmem:[%s5] sm:$0x3]
    %v603 = vperm.slane %v601, 0
    %v604 = vperm.slane %v601, 1
    %607 = vmatpush.msra.mxu0 %v567
    %608 = vmatpush.msra.mxu0 %v565
    %609 = vmatpush.msra.mxu0 %v563
    %610 = vmatpush.msra.mxu0 %v561
    %611 = vmatpush.msra.mxu0 %v559
    %612 = vmatpush.msra.mxu0 %v557
    %613 = vmatpush.msra.mxu0 %v555
    %614 = vmatpush.msra.mxu0 %v553
    %615 = vmatpush.msra.mxu0 %v551
    %616 = vmatpush.msra.mxu0 %v549
    %617 = vmatpush.msra.mxu0 %v547
    %618 = vmatpush.msra.mxu0 %v545
    %619 = vmatpush.msra.mxu0 %v543
    %620 = vmatpush.msra.mxu0 %v541
    %621 = vmatpush.msra.mxu0 %v539
    %622 = vmatpush.msra.mxu0 %v537
    %623 = vmatmul.f32.gmra.mxu0 %v505
    %v624 = vpop.f32.mrf.mxu0
    %v625 = vadd.f32 %v603, %v624
    %626 = vmatmul.f32.gmra.mxu0 %v507
    %v627 = vpop.f32.mrf.mxu0
    %v628 = vadd.f32 %v603, %v627
    %629 = vmatmul.f32.gmra.mxu0 %v509
    %v630 = vpop.f32.mrf.mxu0
    %v631 = vadd.f32 %v603, %v630
    %632 = vmatmul.f32.gmra.mxu0 %v511
    %v633 = vpop.f32.mrf.mxu0
    %v634 = vadd.f32 %v603, %v633
    %635 = vmatmul.f32.gmra.mxu0 %v513
    %v636 = vpop.f32.mrf.mxu0
    %v637 = vadd.f32 %v603, %v636
    %638 = vmatmul.f32.gmra.mxu0 %v515
    %v639 = vpop.f32.mrf.mxu0
    %v640 = vadd.f32 %v603, %v639
    %641 = vmatmul.f32.gmra.mxu0 %v517
    %v642 = vpop.f32.mrf.mxu0
    %v643 = vadd.f32 %v603, %v642
    %644 = vmatmul.f32.gmra.mxu0 %v519
    %v645 = vpop.f32.mrf.mxu0
    %v646 = vadd.f32 %v603, %v645
    %647 = vmatmul.f32.gmra.mxu0 %v521
    %v648 = vpop.f32.mrf.mxu0
    %v649 = vadd.f32 %v603, %v648
    %650 = vmatmul.f32.gmra.mxu0 %v523
    %v651 = vpop.f32.mrf.mxu0
    %v652 = vadd.f32 %v603, %v651
    %653 = vmatmul.f32.gmra.mxu0 %v525
    %v654 = vpop.f32.mrf.mxu0
    %v655 = vadd.f32 %v603, %v654
    %656 = vmatmul.f32.gmra.mxu0 %v527
    %v657 = vpop.f32.mrf.mxu0
    %v658 = vadd.f32 %v603, %v657
    %659 = vmatmul.f32.gmra.mxu0 %v529
    %v660 = vpop.f32.mrf.mxu0
    %v661 = vadd.f32 %v603, %v660
    %662 = vmatmul.f32.gmra.mxu0 %v531
    %v663 = vpop.f32.mrf.mxu0
    %v664 = vadd.f32 %v603, %v663
    %665 = vmatmul.f32.gmra.mxu0 %v533
    %v666 = vpop.f32.mrf.mxu0
    %v667 = vadd.f32 %v603, %v666
    %668 = vmatmul.f32.gmra.mxu0 %v535
    %v669 = vpop.f32.mrf.mxu0
    %v670 = vadd.f32 %v603, %v669
    %671 = vdwg.mxu0
    %672 = vmatpush.msra.mxu0 %v599
    %673 = vmatpush.msra.mxu0 %v597
    %674 = vmatpush.msra.mxu0 %v595
    %675 = vmatpush.msra.mxu0 %v593
    %676 = vmatpush.msra.mxu0 %v591
    %677 = vmatpush.msra.mxu0 %v589
    %678 = vmatpush.msra.mxu0 %v587
    %679 = vmatpush.msra.mxu0 %v585
    %680 = vmatpush.msra.mxu0 %v583
    %681 = vmatpush.msra.mxu0 %v581
    %682 = vmatpush.msra.mxu0 %v579
    %683 = vmatpush.msra.mxu0 %v577
    %684 = vmatpush.msra.mxu0 %v575
    %685 = vmatpush.msra.mxu0 %v573
    %686 = vmatpush.msra.mxu0 %v571
    %687 = vmatpush.msra.mxu0 %v569
    %688 = vmatmul.f32.gmra.mxu0 %v506
    %v689 = vpop.f32.mrf.mxu0
    %v690 = vadd.f32 %v625, %v689
    %691 = vmatmul.f32.gmra.mxu0 %v508
    %v692 = vpop.f32.mrf.mxu0
    %v693 = vadd.f32 %v628, %v692
    %694 = vmatmul.f32.gmra.mxu0 %v510
    %v695 = vpop.f32.mrf.mxu0
    %v696 = vadd.f32 %v631, %v695
    %697 = vmatmul.f32.gmra.mxu0 %v512
    %v698 = vpop.f32.mrf.mxu0
    %v699 = vadd.f32 %v634, %v698
    %700 = vmatmul.f32.gmra.mxu0 %v514
    %v701 = vpop.f32.mrf.mxu0
    %v702 = vadd.f32 %v637, %v701
    %703 = vmatmul.f32.gmra.mxu0 %v516
    %v704 = vpop.f32.mrf.mxu0
    %v705 = vadd.f32 %v640, %v704
    %706 = vmatmul.f32.gmra.mxu0 %v518
    %v707 = vpop.f32.mrf.mxu0
    %v708 = vadd.f32 %v643, %v707
    %709 = vmatmul.f32.gmra.mxu0 %v520
    %v710 = vpop.f32.mrf.mxu0
    %v711 = vadd.f32 %v646, %v710
    %712 = vmatmul.f32.gmra.mxu0 %v522
    %v713 = vpop.f32.mrf.mxu0
    %v714 = vadd.f32 %v649, %v713
    %715 = vmatmul.f32.gmra.mxu0 %v524
    %v716 = vpop.f32.mrf.mxu0
    %v717 = vadd.f32 %v652, %v716
    %718 = vmatmul.f32.gmra.mxu0 %v526
    %v719 = vpop.f32.mrf.mxu0
    %v720 = vadd.f32 %v655, %v719
    %721 = vmatmul.f32.gmra.mxu0 %v528
    %v722 = vpop.f32.mrf.mxu0
    %v723 = vadd.f32 %v658, %v722
    %724 = vmatmul.f32.gmra.mxu0 %v530
    %v725 = vpop.f32.mrf.mxu0
    %v726 = vadd.f32 %v661, %v725
    %727 = vmatmul.f32.gmra.mxu0 %v532
    %v728 = vpop.f32.mrf.mxu0
    %v729 = vadd.f32 %v664, %v728
    %730 = vmatmul.f32.gmra.mxu0 %v534
    %v731 = vpop.f32.mrf.mxu0
    %v732 = vadd.f32 %v667, %v731
    %733 = vmatmul.f32.gmra.mxu0 %v536
    %v734 = vpop.f32.mrf.mxu0
    %v735 = vadd.f32 %v670, %v734
    %736 = vdwg.mxu0
    %737 = vmatpush.msra.mxu0 %v568
    %738 = vmatpush.msra.mxu0 %v566
    %739 = vmatpush.msra.mxu0 %v564
    %740 = vmatpush.msra.mxu0 %v562
    %741 = vmatpush.msra.mxu0 %v560
    %742 = vmatpush.msra.mxu0 %v558
    %743 = vmatpush.msra.mxu0 %v556
    %744 = vmatpush.msra.mxu0 %v554
    %745 = vmatpush.msra.mxu0 %v552
    %746 = vmatpush.msra.mxu0 %v550
    %747 = vmatpush.msra.mxu0 %v548
    %748 = vmatpush.msra.mxu0 %v546
    %749 = vmatpush.msra.mxu0 %v544
    %750 = vmatpush.msra.mxu0 %v542
    %751 = vmatpush.msra.mxu0 %v540
    %752 = vmatpush.msra.mxu0 %v538
    %753 = vmatmul.f32.gmra.mxu0 %v505
    %v754 = vpop.f32.mrf.mxu0
    %v755 = vadd.f32 %v604, %v754
    %756 = vmatmul.f32.gmra.mxu0 %v507
    %v757 = vpop.f32.mrf.mxu0
    %v758 = vadd.f32 %v604, %v757
    %759 = vmatmul.f32.gmra.mxu0 %v509
    %v760 = vpop.f32.mrf.mxu0
    %v761 = vadd.f32 %v604, %v760
    %762 = vmatmul.f32.gmra.mxu0 %v511
    %v763 = vpop.f32.mrf.mxu0
    %v764 = vadd.f32 %v604, %v763
    %765 = vmatmul.f32.gmra.mxu0 %v513
    %v766 = vpop.f32.mrf.mxu0
    %v767 = vadd.f32 %v604, %v766
    %768 = vmatmul.f32.gmra.mxu0 %v515
    %v769 = vpop.f32.mrf.mxu0
    %v770 = vadd.f32 %v604, %v769
    %771 = vmatmul.f32.gmra.mxu0 %v517
    %v772 = vpop.f32.mrf.mxu0
    %v773 = vadd.f32 %v604, %v772
    %774 = vmatmul.f32.gmra.mxu0 %v519
    %v775 = vpop.f32.mrf.mxu0
    %v776 = vadd.f32 %v604, %v775
    %777 = vmatmul.f32.gmra.mxu0 %v521
    %v778 = vpop.f32.mrf.mxu0
    %v779 = vadd.f32 %v604, %v778
    %780 = vmatmul.f32.gmra.mxu0 %v523
    %v781 = vpop.f32.mrf.mxu0
    %v782 = vadd.f32 %v604, %v781
    %783 = vmatmul.f32.gmra.mxu0 %v525
    %v784 = vpop.f32.mrf.mxu0
    %v785 = vadd.f32 %v604, %v784
    %786 = vmatmul.f32.gmra.mxu0 %v527
    %v787 = vpop.f32.mrf.mxu0
    %v788 = vadd.f32 %v604, %v787
    %789 = vmatmul.f32.gmra.mxu0 %v529
    %v790 = vpop.f32.mrf.mxu0
    %v791 = vadd.f32 %v604, %v790
    %792 = vmatmul.f32.gmra.mxu0 %v531
    %v793 = vpop.f32.mrf.mxu0
    %v794 = vadd.f32 %v604, %v793
    %795 = vmatmul.f32.gmra.mxu0 %v533
    %v796 = vpop.f32.mrf.mxu0
    %v797 = vadd.f32 %v604, %v796
    %798 = vmatmul.f32.gmra.mxu0 %v535
    %v799 = vpop.f32.mrf.mxu0
    %v800 = vadd.f32 %v604, %v799
    %801 = vdwg.mxu0
    %802 = vmatpush.msra.mxu0 %v600
    %803 = vmatpush.msra.mxu0 %v598
    %804 = vmatpush.msra.mxu0 %v596
    %805 = vmatpush.msra.mxu0 %v594
    %806 = vmatpush.msra.mxu0 %v592
    %807 = vmatpush.msra.mxu0 %v590
    %808 = vmatpush.msra.mxu0 %v588
    %809 = vmatpush.msra.mxu0 %v586
    %810 = vmatpush.msra.mxu0 %v584
    %811 = vmatpush.msra.mxu0 %v582
    %812 = vmatpush.msra.mxu0 %v580
    %813 = vmatpush.msra.mxu0 %v578
    %814 = vmatpush.msra.mxu0 %v576
    %815 = vmatpush.msra.mxu0 %v574
    %816 = vmatpush.msra.mxu0 %v572
    %817 = vmatpush.msra.mxu0 %v570
    %818 = vmatmul.f32.gmra.mxu0 %v506
    %v819 = vpop.f32.mrf.mxu0
    %v820 = vadd.f32 %v755, %v819
    %821 = vmatmul.f32.gmra.mxu0 %v508
    %v822 = vpop.f32.mrf.mxu0
    %v823 = vadd.f32 %v758, %v822
    %824 = vmatmul.f32.gmra.mxu0 %v510
    %v825 = vpop.f32.mrf.mxu0
    %v826 = vadd.f32 %v761, %v825
    %827 = vmatmul.f32.gmra.mxu0 %v512
    %v828 = vpop.f32.mrf.mxu0
    %v829 = vadd.f32 %v764, %v828
    %830 = vmatmul.f32.gmra.mxu0 %v514
    %v831 = vpop.f32.mrf.mxu0
    %v832 = vadd.f32 %v767, %v831
    %833 = vmatmul.f32.gmra.mxu0 %v516
    %v834 = vpop.f32.mrf.mxu0
    %v835 = vadd.f32 %v770, %v834
    %836 = vmatmul.f32.gmra.mxu0 %v518
    %v837 = vpop.f32.mrf.mxu0
    %v838 = vadd.f32 %v773, %v837
    %839 = vmatmul.f32.gmra.mxu0 %v520
    %v840 = vpop.f32.mrf.mxu0
    %v841 = vadd.f32 %v776, %v840
    %842 = vmatmul.f32.gmra.mxu0 %v522
    %v843 = vpop.f32.mrf.mxu0
    %v844 = vadd.f32 %v779, %v843
    %845 = vmatmul.f32.gmra.mxu0 %v524
    %v846 = vpop.f32.mrf.mxu0
    %v847 = vadd.f32 %v782, %v846
    %848 = vmatmul.f32.gmra.mxu0 %v526
    %v849 = vpop.f32.mrf.mxu0
    %v850 = vadd.f32 %v785, %v849
    %851 = vmatmul.f32.gmra.mxu0 %v528
    %v852 = vpop.f32.mrf.mxu0
    %v853 = vadd.f32 %v788, %v852
    %854 = vmatmul.f32.gmra.mxu0 %v530
    %v855 = vpop.f32.mrf.mxu0
    %v856 = vadd.f32 %v791, %v855
    %857 = vmatmul.f32.gmra.mxu0 %v532
    %v858 = vpop.f32.mrf.mxu0
    %v859 = vadd.f32 %v794, %v858
    %860 = vmatmul.f32.gmra.mxu0 %v534
    %v861 = vpop.f32.mrf.mxu0
    %v862 = vadd.f32 %v797, %v861
    %863 = vmatmul.f32.gmra.mxu0 %v536
    %v864 = vpop.f32.mrf.mxu0
    %v865 = vadd.f32 %v800, %v864
    %866 = vdwg.mxu0
    %v867 = vmax.f32 %v690, 0.0
    %v868 = vmax.f32 %v820, 0.0
    %v869 = vmax.f32 %v693, 0.0
    %v870 = vmax.f32 %v823, 0.0
    %v871 = vmax.f32 %v696, 0.0
    %v872 = vmax.f32 %v826, 0.0
    %v873 = vmax.f32 %v699, 0.0
    %v874 = vmax.f32 %v829, 0.0
    %v875 = vmax.f32 %v702, 0.0
    %v876 = vmax.f32 %v832, 0.0
    %v877 = vmax.f32 %v705, 0.0
    %v878 = vmax.f32 %v835, 0.0
    %v879 = vmax.f32 %v708, 0.0
    %v880 = vmax.f32 %v838, 0.0
    %v881 = vmax.f32 %v711, 0.0
    %v882 = vmax.f32 %v841, 0.0
    %v883 = vmax.f32 %v714, 0.0
    %v884 = vmax.f32 %v844, 0.0
    %v885 = vmax.f32 %v717, 0.0
    %v886 = vmax.f32 %v847, 0.0
    %v887 = vmax.f32 %v720, 0.0
    %v888 = vmax.f32 %v850, 0.0
    %v889 = vmax.f32 %v723, 0.0
    %v890 = vmax.f32 %v853, 0.0
    %v891 = vmax.f32 %v726, 0.0
    %v892 = vmax.f32 %v856, 0.0
    %v893 = vmax.f32 %v729, 0.0
    %v894 = vmax.f32 %v859, 0.0
    %v895 = vmax.f32 %v732, 0.0
    %v896 = vmax.f32 %v862, 0.0
    %v897 = vmax.f32 %v735, 0.0
    %v898 = vmax.f32 %v865, 0.0
    %v899 = vld [vmem:[%s6] sm:$0x3]
    %v901 = vperm.slane %v899, 0
    %v902 = vperm.slane %v899, 1
    %v905 = vmul.f32 %v867, %v901
    %v906 = vmul.f32 %v868, %v902
    %v907 = vmul.f32 %v869, %v901
    %v908 = vmul.f32 %v870, %v902
    %v909 = vmul.f32 %v871, %v901
    %v910 = vmul.f32 %v872, %v902
    %v911 = vmul.f32 %v873, %v901
    %v912 = vmul.f32 %v874, %v902
    %v913 = vmul.f32 %v875, %v901
    %v914 = vmul.f32 %v876, %v902
    %v915 = vmul.f32 %v877, %v901
    %v916 = vmul.f32 %v878, %v902
    %v917 = vmul.f32 %v879, %v901
    %v918 = vmul.f32 %v880, %v902
    %v919 = vmul.f32 %v881, %v901
    %v920 = vmul.f32 %v882, %v902
    %v921 = vmul.f32 %v883, %v901
    %v922 = vmul.f32 %v884, %v902
    %v923 = vmul.f32 %v885, %v901
    %v924 = vmul.f32 %v886, %v902
    %v925 = vmul.f32 %v887, %v901
    %v926 = vmul.f32 %v888, %v902
    %v927 = vmul.f32 %v889, %v901
    %v928 = vmul.f32 %v890, %v902
    %v929 = vmul.f32 %v891, %v901
    %v930 = vmul.f32 %v892, %v902
    %v931 = vmul.f32 %v893, %v901
    %v932 = vmul.f32 %v894, %v902
    %v933 = vmul.f32 %v895, %v901
    %v934 = vmul.f32 %v896, %v902
    %v935 = vmul.f32 %v897, %v901
    %v936 = vmul.f32 %v898, %v902
    %v937 = vadd.f32 %v905, %v906
    %938 = vadd.xlane.f32.xlu0 %v937
    %v939 = vpop.xlane.xlu0 %938
    %v940 = vadd.f32 %v907, %v908
    %941 = vadd.xlane.f32.xlu0 %v940
    %v942 = vpop.xlane.xlu0 %941
    %v943 = vadd.f32 %v909, %v910
    %944 = vadd.xlane.f32.xlu0 %v943
    %v945 = vpop.xlane.xlu0 %944
    %v946 = vadd.f32 %v911, %v912
    %947 = vadd.xlane.f32.xlu0 %v946
    %v948 = vpop.xlane.xlu0 %947
    %v949 = vadd.f32 %v913, %v914
    %950 = vadd.xlane.f32.xlu0 %v949
    %v951 = vpop.xlane.xlu0 %950
    %v952 = vadd.f32 %v915, %v916
    %953 = vadd.xlane.f32.xlu0 %v952
    %v954 = vpop.xlane.xlu0 %953
    %v955 = vadd.f32 %v917, %v918
    %956 = vadd.xlane.f32.xlu0 %v955
    %v957 = vpop.xlane.xlu0 %956
    %v958 = vadd.f32 %v919, %v920
    %959 = vadd.xlane.f32.xlu0 %v958
    %v960 = vpop.xlane.xlu0 %959
    %v961 = vadd.f32 %v921, %v922
    %962 = vadd.xlane.f32.xlu0 %v961
    %v963 = vpop.xlane.xlu0 %962
    %v964 = vadd.f32 %v923, %v924
    %965 = vadd.xlane.f32.xlu0 %v964
    %v966 = vpop.xlane.xlu0 %965
    %v967 = vadd.f32 %v925, %v926
    %968 = vadd.xlane.f32.xlu0 %v967
    %v969 = vpop.xlane.xlu0 %968
    %v970 = vadd.f32 %v927, %v928
    %971 = vadd.xlane.f32.xlu0 %v970
    %v972 = vpop.xlane.xlu0 %971
    %v973 = vadd.f32 %v929, %v930
    %974 = vadd.xlane.f32.xlu0 %v973
    %v975 = vpop.xlane.xlu0 %974
    %v976 = vadd.f32 %v931, %v932
    %977 = vadd.xlane.f32.xlu0 %v976
    %v978 = vpop.xlane.xlu0 %977
    %v979 = vadd.f32 %v933, %v934
    %980 = vadd.xlane.f32.xlu0 %v979
    %v981 = vpop.xlane.xlu0 %980
    %v982 = vadd.f32 %v935, %v936
    %983 = vadd.xlane.f32.xlu0 %v982
    %v984 = vpop.xlane.xlu0 %983
    %v985 = vlaneseq
    %v986 = vshrl.u32 %v985, 7
    %v987 = vadd.s32 %v986, 8
    %v988 = vadd.s32 %v986, 16
    %v989 = vadd.s32 %v986, 24
    %v990 = vadd.s32 %v986, 32
    %v991 = vadd.s32 %v986, 40
    %v992 = vadd.s32 %v986, 48
    %v993 = vadd.s32 %v986, 56
    %v994 = vadd.s32 %v986, 64
    %v995 = vadd.s32 %v986, 72
    %v996 = vadd.s32 %v986, 80
    %v997 = vadd.s32 %v986, 88
    %v998 = vadd.s32 %v986, 96
    %v999 = vadd.s32 %v986, 104
    %v1000 = vadd.s32 %v986, 112
    %v1001 = vadd.s32 %v986, 120
    %v1002 = vlaneseq
    %v1003 = vand.u32 %v1002, 127
    %vm1004 = vcmp.eq.s32.totalorder %v986, %v1003
    %vm1005 = vcmp.eq.s32.totalorder %v987, %v1003
    %vm1006 = vcmp.eq.s32.totalorder %v988, %v1003
    %vm1007 = vcmp.eq.s32.totalorder %v989, %v1003
    %vm1008 = vcmp.eq.s32.totalorder %v990, %v1003
    %vm1009 = vcmp.eq.s32.totalorder %v991, %v1003
    %vm1010 = vcmp.eq.s32.totalorder %v992, %v1003
    %vm1011 = vcmp.eq.s32.totalorder %v993, %v1003
    %vm1012 = vcmp.eq.s32.totalorder %v994, %v1003
    %vm1013 = vcmp.eq.s32.totalorder %v995, %v1003
    %vm1014 = vcmp.eq.s32.totalorder %v996, %v1003
    %vm1015 = vcmp.eq.s32.totalorder %v997, %v1003
    %vm1016 = vcmp.eq.s32.totalorder %v998, %v1003
    %vm1017 = vcmp.eq.s32.totalorder %v999, %v1003
    %vm1018 = vcmp.eq.s32.totalorder %v1000, %v1003
    %vm1019 = vcmp.eq.s32.totalorder %v1001, %v1003
    %v1020 = vsel %vm1004, 1.0, 0.0
    %v1021 = vsel %vm1005, 1.0, 0.0
    %v1022 = vsel %vm1006, 1.0, 0.0
    %v1023 = vsel %vm1007, 1.0, 0.0
    %v1024 = vsel %vm1008, 1.0, 0.0
    %v1025 = vsel %vm1009, 1.0, 0.0
    %v1026 = vsel %vm1010, 1.0, 0.0
    %v1027 = vsel %vm1011, 1.0, 0.0
    %v1028 = vsel %vm1012, 1.0, 0.0
    %v1029 = vsel %vm1013, 1.0, 0.0
    %v1030 = vsel %vm1014, 1.0, 0.0
    %v1031 = vsel %vm1015, 1.0, 0.0
    %v1032 = vsel %vm1016, 1.0, 0.0
    %v1033 = vsel %vm1017, 1.0, 0.0
    %v1034 = vsel %vm1018, 1.0, 0.0
    %v1035 = vsel %vm1019, 1.0, 0.0
    %v1036 = vmul.f32 %v939, %v1020
    %v1037 = vmul.f32 %v942, %v1021
    %v1038 = vmul.f32 %v945, %v1022
    %v1039 = vmul.f32 %v948, %v1023
    %v1040 = vmul.f32 %v951, %v1024
    %v1041 = vmul.f32 %v954, %v1025
    %v1042 = vmul.f32 %v957, %v1026
    %v1043 = vmul.f32 %v960, %v1027
    %v1044 = vmul.f32 %v963, %v1028
    %v1045 = vmul.f32 %v966, %v1029
    %v1046 = vmul.f32 %v969, %v1030
    %v1047 = vmul.f32 %v972, %v1031
    %v1048 = vmul.f32 %v975, %v1032
    %v1049 = vmul.f32 %v978, %v1033
    %v1050 = vmul.f32 %v981, %v1034
    %v1051 = vmul.f32 %v984, %v1035
    %v1052 = vadd.f32 %v1036, %v1037
    %v1053 = vadd.f32 %v1052, %v1038
    %v1054 = vadd.f32 %v1053, %v1039
    %v1055 = vadd.f32 %v1054, %v1040
    %v1056 = vadd.f32 %v1055, %v1041
    %v1057 = vadd.f32 %v1056, %v1042
    %v1058 = vadd.f32 %v1057, %v1043
    %v1059 = vadd.f32 %v1058, %v1044
    %v1060 = vadd.f32 %v1059, %v1045
    %v1061 = vadd.f32 %v1060, %v1046
    %v1062 = vadd.f32 %v1061, %v1047
    %v1063 = vadd.f32 %v1062, %v1048
    %v1064 = vadd.f32 %v1063, %v1049
    %v1065 = vadd.f32 %v1064, %v1050
    %v1066 = vadd.f32 %v1065, %v1051
    %v1067 = vrot.slane %v1066, 4
    %v1068 = vadd.f32 %v1066, %v1067
    %v1069 = vrot.slane %v1068, 2
    %v1070 = vadd.f32 %v1068, %v1069
    %v1071 = vrot.slane %v1070, 1
    %v1072 = vadd.f32 %v1070, %v1071
    %v1073 = vld [vmem:[#allocation2] sm:$0x1]
    %1075 = vset.pattern.permute.xlu0 0
    %1076 = vperm.xlu0 %1075, %v1073
    %v1077 = vpop.permute.xlu0 %1076
    %v1079 = vperm.slane %v1077, 0
    %v1080 = vadd.f32 %v1072, %v1079
    %1081 = vst [vmem:[#allocation11] sm:$0x1] %v1080
    // Predicated region
    $region50: #{tpu_custom_call.1} parent=1 // pred_check
      _
    $region51: #{tpu_custom_call.1} parent=1 // pred_check_branch
      %1083 = sbr.rel (0) target = $region53
    $region52: #{tpu_custom_call.1} parent=1 // pred_region
      %1085 = vsyncadd [#allocation5], 0
      %s1087 = sshll.u32 [#allocation11], 4
      %s1088 = int_to_ptr.vmem [resolvable:$true] %s1087
      %s1089 = sshll.u32 %s8, 4
      %s1090 = int_to_ptr.hbm [resolvable:$true] %s1089
      %1092 = dma.vmem_to_hbm [thread:$0]  %s1088, 16, %s1090, [#allocation5]
    $region53: #{tpu_custom_call.1} parent=1 // pred_fallthru
      _
    // Predicated region
    $region54: #{tpu_custom_call.1} parent=1 // pred_check
      _
    $region55: #{tpu_custom_call.1} parent=1 // pred_check_branch
      %1094 = sbr.rel (0) target = $region57
    $region56: #{tpu_custom_call.1} parent=1 // pred_region
      %1096 = dma.done [#allocation5], 16
    $region57: #{tpu_custom_call.1} parent=1 // pred_fallthru
      _
    %1097 = vsyncpa [#allocation4], 1
    %1098 = vsyncpa [#allocation7], 1
    %1099 = vsyncpa [#allocation10], 1
    %1100 = vsyncpa [#allocation5], 1

</llo_original>
